<compile_context>
chip_gen: v5e
topology: v5e:2x2
jax: 0.10.0
libtpu: 0.0.40
codegen_flags: <defaults>
</compile_context>

<pallas_src>
import math
from functools import partial

import jax
import jax.numpy as jnp
from jax.experimental import pallas as pl
from jax.experimental.pallas import tpu as pltpu


def _round_up(x, m):
    return ((x + m - 1) // m) * m


def _choose_tile_rows(H, W, max_tile_elems, prefer_split=False):
    """Pick tile_rows: divides H, >= 4, and (tile_rows*W) % 128 == 0 (lane alignment).
    Prefer the largest tile whose flattened length fits max_tile_elems."""
    cands = [t for t in range(4, H + 1) if H % t == 0 and (t * W) % 128 == 0]
    if not cands:
        # TODO(synk): masked/ragged fallback (pad H, slice output in the wrapper) for
        # shapes with no aligned row tile.
        raise ValueError(
            f"No valid row tile for H={H}, W={W} "
            "(need a divisor t>=4 of H with (t*W) % 128 == 0).")
    if prefer_split:
        split = [t for t in cands if t < H]
        if split:
            cands = split
    within = [t for t in cands if t * W <= max_tile_elems]
    # TODO(synk): if even the smallest aligned tile exceeds max_tile_elems this can be
    # VMEM-tight on v5e; needs the ragged fallback above.
    return max(within) if within else min(cands)


def _make_input_proj_kernel(C, O, W, N, KH, KW, K, K_pad, halo, compute_dtype):
    """Kernel for one (batch, row-tile) grid cell.

    xa_ref, xb_ref : (1, C, N) current / next flattened row-blocks of the row-padded
                     input (same HBM array viewed through two BlockSpecs -> a halo
                     window without overlapping blocks, no manual DMA needed).
    w_ref          : (K_pad, O) weights, row k = (kh*KW + kw)*C + c; rows >= K are zero.
    b_ref          : (1, O) bias (f32).
    o_ref          : (1, N, O) output tile, N = tile_rows * W flattened pixels.
    taps_ref       : (K_pad, N) VMEM scratch, the fused im2col tap stack.
    """
    def kernel(xa_ref, xb_ref, w_ref, b_ref, o_ref, taps_ref):
        # Shared halo window: current block plus the first `halo` pixels of the next
        # block (max tap offset is 3W+1 << N) instead of a full 2N concat copy.
        window = jnp.concatenate([xa_ref[0], xb_ref[0, :, :halo]], axis=-1)  # (C, N+halo)

        # Column index of each flattened pixel.  A flat row-major shift pulls in the
        # neighbouring row's edge pixel where the conv expects zero padding; mask it.
        col = jax.lax.broadcasted_iota(jnp.int32, (1, N), 1) % W
        not_left = col > 0                # for kw == 0 taps
        not_right = col < (W - 1)         # for kw == KW-1 taps

        # Build the fused tap stack: rows [t*C, (t+1)*C) hold tap t for all C channels.
        # TODO(synk): if the unaligned lane slices show up as full-window copies in
        # pl.lower_as_mlir, route the shifts through pltpu.roll + aligned slices.
        for kh in range(KH):
            for kw in range(KW):
                t = kh * KW + kw
                shift = (kh + 1) * W + (kw - 1)          # static in-window offset
                tap = window[:, shift:shift + N]          # (C, N), lane-dense
                if kw == 0:
                    tap = jnp.where(not_left, tap, 0)
                elif kw == KW - 1:
                    tap = jnp.where(not_right, tap, 0)
                taps_ref[pl.ds(t * C, C), :] = tap
        if K_pad > K:
            # Zero the padding rows (their weight rows are zero too, but stale VMEM
            # could hold NaN/Inf bit patterns).
            taps_ref[pl.ds(K, K_pad - K), :] = jnp.zeros((K_pad - K, N), compute_dtype)

        # ONE K=K_pad matmul, contracting the sublane axis of both operands, so the
        # MXU emits the accumulator directly in (N, O) store orientation.
        acc = jax.lax.dot_general(
            taps_ref[...], w_ref[...],
            dimension_numbers=(((0,), (0,)), ((), ())),
            preferred_element_type=jnp.float32)           # (N, O), f32

        acc = acc + b_ref[...]                            # bias, f32, broadcast on rows
        acc = jnp.where(acc >= 0.0, acc, 0.01 * acc)      # LeakyReLU(0.01)
        # TODO(synk): pack pixel pairs into a (N//2, 2*O) = 128-lane-dense output slab
        # (review option B) once the (N, O) -> (N//2, 2O) relayout is verified on Mosaic;
        # for now the O=64 store is masked at 50% lane density.
        o_ref[0] = acc.astype(o_ref.dtype)
    return kernel


@partial(jax.jit, static_argnames=("compute_dtype", "out_dtype", "max_tile_elems"))
def input_proj_forward(x, weight, bias, *, compute_dtype=jnp.float32,
                       out_dtype=jnp.float32, max_tile_elems=4096):
    """x: (B, C, H, W); weight: (O, C, 3, 3); bias: (O,) -> (B, H*W, O)."""
    B, C, H, W = x.shape
    O, C_w, KH, KW = weight.shape
    assert C_w == C and KH == 3 and KW == 3, "InputProj uses a fixed 3x3 conv, pad 1"

    tile_rows = _choose_tile_rows(H, W, max_tile_elems, prefer_split=(B == 1))
    n_row_tiles = H // tile_rows
    N = tile_rows * W                         # flattened pixels per grid step
    halo = min(_round_up(3 * W + 1, 128), N)  # lanes read from the next row block
    K = KH * KW * C
    K_pad = _round_up(K, 16)                  # fused contraction length (27 -> 32)

    # Stored rows: [top conv pad (2 rows), image rows, bottom conv pad, zero fill],
    # padded so the flat array holds (n_row_tiles + 1) full row-blocks and every tap
    # offset inside the halo window is >= 0.
    H_store = (n_row_tiles + 1) * tile_rows
    x_store = jnp.zeros((B, C, H_store, W), compute_dtype)
    x_store = x_store.at[:, :, 2:H + 2, :].set(x.astype(compute_dtype))
    x_flat = x_store.reshape(B, C, H_store * W)          # free reshape

    # (O, C, KH, KW) -> (K_pad, O): row k = (kh*KW + kw)*C + c, zero-padded to K_pad.
    w_perm = jnp.transpose(weight, (2, 3, 1, 0)).reshape(K, O)
    w_stack = jnp.zeros((K_pad, O), compute_dtype).at[:K, :].set(
        w_perm.astype(compute_dtype))
    b_row = bias.reshape(1, O).astype(jnp.float32)

    kernel = _make_input_proj_kernel(C, O, W, N, KH, KW, K, K_pad, halo, compute_dtype)
    in_itemsize = jnp.dtype(compute_dtype).itemsize
    cost = pl.CostEstimate(
        flops=2 * B * H * W * K * O,
        transcendentals=0,
        bytes_accessed=int(x_flat.size * in_itemsize + w_stack.size * in_itemsize
                           + B * H * W * O * jnp.dtype(out_dtype).itemsize),
    )

    return pl.pallas_call(
        kernel,
        out_shape=jax.ShapeDtypeStruct((B, H * W, O), out_dtype),
        grid_spec=pltpu.PrefetchScalarGridSpec(
            num_scalar_prefetch=0,
            grid=(B, n_row_tiles),
            in_specs=[
                pl.BlockSpec((1, C, N), lambda b, h: (b, 0, h)),       # current row block
                pl.BlockSpec((1, C, N), lambda b, h: (b, 0, h + 1)),   # next block (halo)
                pl.BlockSpec((K_pad, O), lambda b, h: (0, 0)),         # resident weights
                pl.BlockSpec((1, O), lambda b, h: (0, 0)),             # resident bias
            ],
            out_specs=pl.BlockSpec((1, N, O), lambda b, h: (b, h, 0)),
            scratch_shapes=[pltpu.VMEM((K_pad, N), compute_dtype)],    # fused tap stack
        ),
        compiler_params=pltpu.CompilerParams(
            dimension_semantics=("parallel", "parallel"),
            vmem_limit_bytes=32 * 1024 * 1024),
        cost_estimate=cost,
    )(x_flat, x_flat, w_stack, b_row)


class InputProjPallas:
    """Pallas TPU port of InputProj (Conv2d 3x3 s1 p1 + LeakyReLU, then flatten+transpose)."""

    def __init__(self, in_channel=3, out_channel=64, kernel_size=3, key=None,
                 compute_dtype=jnp.float32):
        assert kernel_size == 3
        self.in_channel = in_channel
        self.out_channel = out_channel
        self.compute_dtype = compute_dtype
        key = jax.random.PRNGKey(0) if key is None else key
        w_key, b_key = jax.random.split(key)
        fan_in = in_channel * kernel_size * kernel_size
        bound = 1.0 / math.sqrt(fan_in)       # PyTorch Conv2d default init range
        self.weight = jax.random.uniform(
            w_key, (out_channel, in_channel, kernel_size, kernel_size),
            minval=-bound, maxval=bound, dtype=jnp.float32)
        self.bias = jax.random.uniform(
            b_key, (out_channel,), minval=-bound, maxval=bound, dtype=jnp.float32)

    def __call__(self, x_nchw, max_tile_elems=4096):
        return input_proj_forward(x_nchw, self.weight, self.bias,
                                  compute_dtype=self.compute_dtype,
                                  max_tile_elems=max_tile_elems)


# ------------------------------- Reference ---------------------------------
def input_proj_ref(x, weight, bias, cast_dtype=jnp.float32):
    xc = x.astype(cast_dtype).astype(jnp.float32)
    wc = weight.astype(cast_dtype).astype(jnp.float32)
    y = jax.lax.conv_general_dilated(
        xc, wc, window_strides=(1, 1), padding=((1, 1), (1, 1)),
        dimension_numbers=("NCHW", "OIHW", "NCHW"),
        precision=jax.lax.Precision.HIGHEST)
    y = y + bias.reshape(1, -1, 1, 1)
    y = jnp.where(y >= 0, y, 0.01 * y)
    B, O, H, W = y.shape
    return jnp.transpose(y.reshape(B, O, H * W), (0, 2, 1))    # (B, H*W, O)


if __name__ == "__main__":
    key = jax.random.PRNGKey(0)
    x_key, p_key = jax.random.split(key)

    B, C, H, W = 2, 3, 16, 16
    x = jax.random.normal(x_key, (B, C, H, W), dtype=jnp.float32)

    model = InputProjPallas(in_channel=C, out_channel=64, kernel_size=3, key=p_key)

    # Exact f32 path; max_tile_elems=128 forces tile_rows=8 so the tiled (B, 2) grid
    # and the next-block halo path are actually exercised at this small size.
    out_f32 = jax.block_until_ready(
        input_proj_forward(x, model.weight, model.bias,
                           compute_dtype=jnp.float32, max_tile_elems=128))
    assert out_f32.shape == (B, H * W, 64), out_f32.shape
    ref_f32 = input_proj_ref(x, model.weight, model.bias, cast_dtype=jnp.float32)
    err_f32 = float(jnp.max(jnp.abs(out_f32 - ref_f32)))
    assert jnp.allclose(out_f32, ref_f32, atol=1e-4, rtol=1e-4), err_f32

    # Default tiling (single row tile at this size) — exercise the other grid shape.
    out_f32b = jax.block_until_ready(
        input_proj_forward(x, model.weight, model.bias, compute_dtype=jnp.float32))
    err_f32b = float(jnp.max(jnp.abs(out_f32b - ref_f32)))
    assert jnp.allclose(out_f32b, ref_f32, atol=1e-4, rtol=1e-4), err_f32b

    # bf16 fast path (halves input HBM reads / bf16 MXU); output stays f32.
    out_bf16 = jax.block_until_ready(
        input_proj_forward(x, model.weight, model.bias,
                           compute_dtype=jnp.bfloat16, max_tile_elems=128))
    ref_bf16 = input_proj_ref(x, model.weight, model.bias, cast_dtype=jnp.bfloat16)
    err_bf16 = float(jnp.max(jnp.abs(out_bf16 - ref_bf16)))
    assert jnp.allclose(out_bf16, ref_bf16, atol=2e-2, rtol=2e-2), err_bf16

    print("KERNEL_OK")
</pallas_src>

<mosaic_0001>
module attributes {stable_mosaic.version = 11 : i64} {
  func.func @kernel(%arg0: i32, %arg1: i32, %arg2: memref<1x3x128xf32, #tpu.memory_space<vmem>>, %arg3: memref<1x3x128xf32, #tpu.memory_space<vmem>>, %arg4: memref<32x64xf32, #tpu.memory_space<vmem>>, %arg5: memref<1x64xf32, #tpu.memory_space<vmem>>, %arg6: memref<1x128x64xf32, #tpu.memory_space<vmem>>, %arg7: memref<32x128xf32, #tpu.memory_space<vmem>>) attributes {dimension_semantics = [#tpu.dimension_semantics<parallel>, #tpu.dimension_semantics<parallel>], iteration_bounds = array<i64: 2, 2>, scalar_prefetch = 0 : i64, scratch_operands = 1 : i64, tpu.core_type = #tpu.core_type<tc>, window_params = [{transform_indices = @transform_0, window_bounds = array<i64: 1, 3, 128>}, {transform_indices = @transform_1, window_bounds = array<i64: 1, 3, 128>}, {pipeline_mode = #tpu.pipeline_mode<synchronous>, transform_indices = @transform_2, window_bounds = array<i64: 32, 64>}, {pipeline_mode = #tpu.pipeline_mode<synchronous>, transform_indices = @transform_3, window_bounds = array<i64: 1, 64>}, {transform_indices = @transform_4, window_bounds = array<i64: 1, 128, 64>}]} {
    %c0 = arith.constant 0 : index
    %c0_0 = arith.constant 0 : index
    %c0_1 = arith.constant 0 : index
    %0 = vector.load %arg2[%c0, %c0_0, %c0_1] : memref<1x3x128xf32, #tpu.memory_space<vmem>>, vector<1x3x128xf32>
    %1 = vector.shape_cast %0 : vector<1x3x128xf32> to vector<3x128xf32>
    %c0_2 = arith.constant 0 : index
    %c0_3 = arith.constant 0 : index
    %c0_4 = arith.constant 0 : index
    %2 = vector.load %arg3[%c0_2, %c0_3, %c0_4] : memref<1x3x128xf32, #tpu.memory_space<vmem>>, vector<1x3x128xf32>
    %3 = vector.shape_cast %2 : vector<1x3x128xf32> to vector<3x128xf32>
    %4 = tpu.concatenate %1, %3 in 1 : vector<3x128xf32>, vector<3x128xf32> -> vector<3x256xf32>
    %5 = tpu.iota {dimensions = array<i32: 1>} : vector<1x128xi32>
    %c16_i32 = arith.constant 16 : i32
    %c0_i32 = arith.constant 0 : i32
    %6 = arith.cmpi eq, %c16_i32, %c0_i32 : i32
    %c1_i32 = arith.constant 1 : i32
    %7 = arith.select %6, %c1_i32, %c16_i32 : i32
    %8 = vector.broadcast %7 : i32 to vector<1x128xi32>
    %9 = arith.remsi %5, %8 : vector<1x128xi32>
    %c0_i32_5 = arith.constant 0 : i32
    %10 = vector.broadcast %c0_i32_5 : i32 to vector<1x128xi32>
    %11 = arith.cmpi ne, %9, %10 : vector<1x128xi32>
    %c0_i32_6 = arith.constant 0 : i32
    %12 = vector.broadcast %c0_i32_6 : i32 to vector<1x128xi32>
    %13 = arith.cmpi slt, %9, %12 : vector<1x128xi32>
    %c0_i32_7 = arith.constant 0 : i32
    %14 = arith.cmpi slt, %7, %c0_i32_7 : i32
    %15 = vector.broadcast %14 : i1 to vector<1x128xi1>
    %16 = vector.broadcast %15 : vector<1x128xi1> to vector<1x128xi1>
    %17 = arith.xori %13, %16 : vector<1x128xi1>
    %18 = arith.andi %17, %11 : vector<1x128xi1>
    %19 = vector.broadcast %7 : i32 to vector<1x128xi32>
    %20 = arith.addi %9, %19 : vector<1x128xi32>
    %21 = arith.select %18, %20, %9 : vector<1x128xi1>, vector<1x128xi32>
    %c0_i32_8 = arith.constant 0 : i32
    %22 = vector.broadcast %c0_i32_8 : i32 to vector<1x128xi32>
    %23 = arith.cmpi sgt, %21, %22 : vector<1x128xi32>
    %c15_i32 = arith.constant 15 : i32
    %24 = vector.broadcast %c15_i32 : i32 to vector<1x128xi32>
    %25 = arith.cmpi slt, %21, %24 : vector<1x128xi32>
    %26 = vector.extract_strided_slice %4 {offsets = [0, 15], sizes = [3, 128], strides = [1, 1]} : vector<3x256xf32> to vector<3x128xf32>
    %c0_i32_9 = arith.constant 0 : i32
    %27 = arith.sitofp %c0_i32_9 : i32 to f32
    %28 = vector.shape_cast %23 : vector<1x128xi1> to vector<1x128xi1>
    %29 = vector.broadcast %28 : vector<1x128xi1> to vector<3x128xi1>
    %30 = vector.broadcast %27 : f32 to vector<3x128xf32>
    %31 = arith.select %29, %26, %30 : vector<3x128xi1>, vector<3x128xf32>
    %c0_10 = arith.constant 0 : index
    %c0_11 = arith.constant 0 : index
    %32 = vector.load %arg7[%c0_10, %c0_11] : memref<32x128xf32, #tpu.memory_space<vmem>>, vector<3x128xf32>
    tpu.vector_store %arg7[%c0_10, %c0_11], %31 {strides = array<i32>} : memref<32x128xf32, #tpu.memory_space<vmem>>, vector<3x128xf32>,
    %33 = vector.extract_strided_slice %4 {offsets = [0, 16], sizes = [3, 128], strides = [1, 1]} : vector<3x256xf32> to vector<3x128xf32>
    %c3 = arith.constant 3 : index
    %c0_12 = arith.constant 0 : index
    %34 = vector.load %arg7[%c3, %c0_12] : memref<32x128xf32, #tpu.memory_space<vmem>>, vector<3x128xf32>
    tpu.vector_store %arg7[%c3, %c0_12], %33 {strides = array<i32>} : memref<32x128xf32, #tpu.memory_space<vmem>>, vector<3x128xf32>,
    %35 = vector.extract_strided_slice %4 {offsets = [0, 17], sizes = [3, 128], strides = [1, 1]} : vector<3x256xf32> to vector<3x128xf32>
    %c0_i32_13 = arith.constant 0 : i32
    %36 = arith.sitofp %c0_i32_13 : i32 to f32
    %37 = vector.shape_cast %25 : vector<1x128xi1> to vector<1x128xi1>
    %38 = vector.broadcast %37 : vector<1x128xi1> to vector<3x128xi1>
    %39 = vector.broadcast %36 : f32 to vector<3x128xf32>
    %40 = arith.select %38, %35, %39 : vector<3x128xi1>, vector<3x128xf32>
    %c6 = arith.constant 6 : index
    %c0_14 = arith.constant 0 : index
    %41 = vector.load %arg7[%c6, %c0_14] : memref<32x128xf32, #tpu.memory_space<vmem>>, vector<3x128xf32>
    tpu.vector_store %arg7[%c6, %c0_14], %40 {strides = array<i32>} : memref<32x128xf32, #tpu.memory_space<vmem>>, vector<3x128xf32>,
    %42 = vector.extract_strided_slice %4 {offsets = [0, 31], sizes = [3, 128], strides = [1, 1]} : vector<3x256xf32> to vector<3x128xf32>
    %c0_i32_15 = arith.constant 0 : i32
    %43 = arith.sitofp %c0_i32_15 : i32 to f32
    %44 = vector.shape_cast %23 : vector<1x128xi1> to vector<1x128xi1>
    %45 = vector.broadcast %44 : vector<1x128xi1> to vector<3x128xi1>
    %46 = vector.broadcast %43 : f32 to vector<3x128xf32>
    %47 = arith.select %45, %42, %46 : vector<3x128xi1>, vector<3x128xf32>
    %c9 = arith.constant 9 : index
    %c0_16 = arith.constant 0 : index
    %48 = vector.load %arg7[%c9, %c0_16] : memref<32x128xf32, #tpu.memory_space<vmem>>, vector<3x128xf32>
    tpu.vector_store %arg7[%c9, %c0_16], %47 {strides = array<i32>} : memref<32x128xf32, #tpu.memory_space<vmem>>, vector<3x128xf32>,
    %49 = vector.extract_strided_slice %4 {offsets = [0, 32], sizes = [3, 128], strides = [1, 1]} : vector<3x256xf32> to vector<3x128xf32>
    %c12 = arith.constant 12 : index
    %c0_17 = arith.constant 0 : index
    %50 = vector.load %arg7[%c12, %c0_17] : memref<32x128xf32, #tpu.memory_space<vmem>>, vector<3x128xf32>
    tpu.vector_store %arg7[%c12, %c0_17], %49 {strides = array<i32>} : memref<32x128xf32, #tpu.memory_space<vmem>>, vector<3x128xf32>,
    %51 = vector.extract_strided_slice %4 {offsets = [0, 33], sizes = [3, 128], strides = [1, 1]} : vector<3x256xf32> to vector<3x128xf32>
    %c0_i32_18 = arith.constant 0 : i32
    %52 = arith.sitofp %c0_i32_18 : i32 to f32
    %53 = vector.shape_cast %25 : vector<1x128xi1> to vector<1x128xi1>
    %54 = vector.broadcast %53 : vector<1x128xi1> to vector<3x128xi1>
    %55 = vector.broadcast %52 : f32 to vector<3x128xf32>
    %56 = arith.select %54, %51, %55 : vector<3x128xi1>, vector<3x128xf32>
    %c15 = arith.constant 15 : index
    %c0_19 = arith.constant 0 : index
    %57 = vector.load %arg7[%c15, %c0_19] : memref<32x128xf32, #tpu.memory_space<vmem>>, vector<3x128xf32>
    tpu.vector_store %arg7[%c15, %c0_19], %56 {strides = array<i32>} : memref<32x128xf32, #tpu.memory_space<vmem>>, vector<3x128xf32>,
    %58 = vector.extract_strided_slice %4 {offsets = [0, 47], sizes = [3, 128], strides = [1, 1]} : vector<3x256xf32> to vector<3x128xf32>
    %c0_i32_20 = arith.constant 0 : i32
    %59 = arith.sitofp %c0_i32_20 : i32 to f32
    %60 = vector.shape_cast %23 : vector<1x128xi1> to vector<1x128xi1>
    %61 = vector.broadcast %60 : vector<1x128xi1> to vector<3x128xi1>
    %62 = vector.broadcast %59 : f32 to vector<3x128xf32>
    %63 = arith.select %61, %58, %62 : vector<3x128xi1>, vector<3x128xf32>
    %c18 = arith.constant 18 : index
    %c0_21 = arith.constant 0 : index
    %64 = vector.load %arg7[%c18, %c0_21] : memref<32x128xf32, #tpu.memory_space<vmem>>, vector<3x128xf32>
    tpu.vector_store %arg7[%c18, %c0_21], %63 {strides = array<i32>} : memref<32x128xf32, #tpu.memory_space<vmem>>, vector<3x128xf32>,
    %65 = vector.extract_strided_slice %4 {offsets = [0, 48], sizes = [3, 128], strides = [1, 1]} : vector<3x256xf32> to vector<3x128xf32>
    %c21 = arith.constant 21 : index
    %c0_22 = arith.constant 0 : index
    %66 = vector.load %arg7[%c21, %c0_22] : memref<32x128xf32, #tpu.memory_space<vmem>>, vector<3x128xf32>
    tpu.vector_store %arg7[%c21, %c0_22], %65 {strides = array<i32>} : memref<32x128xf32, #tpu.memory_space<vmem>>, vector<3x128xf32>,
    %67 = vector.extract_strided_slice %4 {offsets = [0, 49], sizes = [3, 128], strides = [1, 1]} : vector<3x256xf32> to vector<3x128xf32>
    %c0_i32_23 = arith.constant 0 : i32
    %68 = arith.sitofp %c0_i32_23 : i32 to f32
    %69 = vector.shape_cast %25 : vector<1x128xi1> to vector<1x128xi1>
    %70 = vector.broadcast %69 : vector<1x128xi1> to vector<3x128xi1>
    %71 = vector.broadcast %68 : f32 to vector<3x128xf32>
    %72 = arith.select %70, %67, %71 : vector<3x128xi1>, vector<3x128xf32>
    %c24 = arith.constant 24 : index
    %c0_24 = arith.constant 0 : index
    %73 = vector.load %arg7[%c24, %c0_24] : memref<32x128xf32, #tpu.memory_space<vmem>>, vector<3x128xf32>
    tpu.vector_store %arg7[%c24, %c0_24], %72 {strides = array<i32>} : memref<32x128xf32, #tpu.memory_space<vmem>>, vector<3x128xf32>,
    %cst = arith.constant 0.000000e+00 : f32
    %74 = vector.broadcast %cst : f32 to vector<5x128xf32>
    %c27 = arith.constant 27 : index
    %c0_25 = arith.constant 0 : index
    %75 = vector.load %arg7[%c27, %c0_25] : memref<32x128xf32, #tpu.memory_space<vmem>>, vector<5x128xf32>
    tpu.vector_store %arg7[%c27, %c0_25], %74 {strides = array<i32>} : memref<32x128xf32, #tpu.memory_space<vmem>>, vector<5x128xf32>,
    %c0_26 = arith.constant 0 : index
    %c0_27 = arith.constant 0 : index
    %76 = vector.load %arg7[%c0_26, %c0_27] : memref<32x128xf32, #tpu.memory_space<vmem>>, vector<32x128xf32>
    %c0_28 = arith.constant 0 : index
    %c0_29 = arith.constant 0 : index
    %77 = vector.load %arg4[%c0_28, %c0_29] : memref<32x64xf32, #tpu.memory_space<vmem>>, vector<32x64xf32>
    %cst_30 = arith.constant dense<0.000000e+00> : vector<128x64xf32>
    %78 = tpu.matmul %76, %77, %cst_30 {dimension_numbers = #tpu.dot_dimension_numbers<[0], [0], [1], [1], [0, 1, 1, 1], [], []>} : vector<32x128xf32>, vector<32x64xf32>, vector<128x64xf32> -> vector<128x64xf32>
    %c0_31 = arith.constant 0 : index
    %c0_32 = arith.constant 0 : index
    %79 = vector.load %arg5[%c0_31, %c0_32] : memref<1x64xf32, #tpu.memory_space<vmem>>, vector<1x64xf32>
    %80 = vector.broadcast %79 : vector<1x64xf32> to vector<128x64xf32>
    %81 = arith.addf %78, %80 : vector<128x64xf32>
    %cst_33 = arith.constant 0.000000e+00 : f32
    %82 = vector.broadcast %cst_33 : f32 to vector<128x64xf32>
    %83 = arith.cmpf oge, %81, %82 : vector<128x64xf32>
    %cst_34 = arith.constant 0.00999999977 : f32
    %84 = vector.broadcast %cst_34 : f32 to vector<128x64xf32>
    %85 = arith.mulf %84, %81 : vector<128x64xf32>
    %86 = arith.select %83, %81, %85 : vector<128x64xi1>, vector<128x64xf32>
    %c0_35 = arith.constant 0 : index
    %c0_36 = arith.constant 0 : index
    %c0_37 = arith.constant 0 : index
    %87 = vector.load %arg6[%c0_35, %c0_36, %c0_37] : memref<1x128x64xf32, #tpu.memory_space<vmem>>, vector<1x128x64xf32>
    %88 = vector.shape_cast %87 : vector<1x128x64xf32> to vector<128x64xf32>
    %89 = vector.shape_cast %86 : vector<128x64xf32> to vector<1x128x64xf32>
    tpu.vector_store %arg6[%c0_35, %c0_36, %c0_37], %89 {strides = array<i32>} : memref<1x128x64xf32, #tpu.memory_space<vmem>>, vector<1x128x64xf32>,
    return
  }
  func.func @transform_0(%arg0: i32, %arg1: i32) -> (i32, i32, i32) {
    %c0_i32 = arith.constant 0 : i32
    %c0_i32_0 = arith.constant 0 : i32
    return %arg0, %c0_i32, %arg1 : i32, i32, i32
  }
  func.func @transform_1(%arg0: i32, %arg1: i32) -> (i32, i32, i32) {
    %c1_i32 = arith.constant 1 : i32
    %0 = arith.addi %arg1, %c1_i32 : i32
    %c0_i32 = arith.constant 0 : i32
    %c0_i32_0 = arith.constant 0 : i32
    return %arg0, %c0_i32, %0 : i32, i32, i32
  }
  func.func @transform_2(%arg0: i32, %arg1: i32) -> (i32, i32) {
    %c0_i32 = arith.constant 0 : i32
    %c0_i32_0 = arith.constant 0 : i32
    %c0_i32_1 = arith.constant 0 : i32
    return %c0_i32, %c0_i32_0 : i32, i32
  }
  func.func @transform_3(%arg0: i32, %arg1: i32) -> (i32, i32) {
    %c0_i32 = arith.constant 0 : i32
    %c0_i32_0 = arith.constant 0 : i32
    %c0_i32_1 = arith.constant 0 : i32
    return %c0_i32, %c0_i32_0 : i32, i32
  }
  func.func @transform_4(%arg0: i32, %arg1: i32) -> (i32, i32, i32) {
    %c0_i32 = arith.constant 0 : i32
    %c0_i32_0 = arith.constant 0 : i32
    return %arg0, %arg1, %c0_i32 : i32, i32, i32
  }
}

</mosaic_0001>

<llo_original>
// kernel: input_proj_forward.1
$region0: #{input_proj_forward.1}
  #allocation0 [shape = 'u32[]', space=smem, size = 0x4, offset = 0x4, fixed_abs, tag = 'smem constant byte address 0x4 - core index']
  #allocation1 [shape = 'u32[72,128]{1,0:T(1,128)}', space=vmem, size = 0x9000, scoped, tag = 'internal scratch']
  #allocation2 [shape = 'f32[32,128]{1,0:T(8,128)}', space=vmem, size = 0x4000, scoped, tag = 'scratch operand']
  %s0 = inlined_call_operand.vmem [shape: f32[2,3,384], index: 0, kind: input, shape index: {}, may-alias: {0,1}]
  %s1 = inlined_call_operand.vmem [shape: f32[2,3,384], index: 1, kind: input, shape index: {}, may-alias: {0,1}]
  %s2 = inlined_call_operand.vmem [shape: f32[32,64], index: 2, kind: input, shape index: {}]
  %s3 = inlined_call_operand.vmem [shape: f32[1,64], index: 3, kind: input, shape index: {}]
  %s4 = inlined_call_operand.vmem [shape: f32[2,256,64], index: 4, kind: output, shape index: {}]
  %s5 = sld [smem:[#allocation0]]
  $region49: #{input_proj_forward.1} parent=0
    _
  %s7 = ssub.s32 1, %s5
  %s8 = scalar_select 0, %s7, %s5
  loop: start=0, step=1, limit=6
  $region2: #{input_proj_forward.1} parent=0 // loop_pre_header
    _
  $region3: #{input_proj_forward.1} parent=0 // loop_header
    %s10 = sphi 0, %s14
    %p11 = scmp.ge.s32.totalorder %s10, 6
    %s17 = sphi 0, %s29
    %s18 = sphi 0, %s25
    %s19 = sphi 0, %s17
    %s20 = sphi 0, %s18
    %s21 = sphi 0, %s19
    %s22 = sphi 0, %s20
    %s34 = sphi 0, %s36
    %s37 = sphi 0, %s34
    %s38 = sphi 0, %s37
    %s54 = sphi 0, %s38
    %s64 = sphi 0, %s66
    %s67 = sphi 0, %s64
    %s68 = sphi 0, %s67
    %s84 = sphi 0, %s68
    %s88 = sphi 0, %s88
    %s90 = sphi 0, %s88
    %s91 = sphi 0, %s90
    %s105 = sphi 0, %s91
    %s109 = sphi 0, %s109
    %s111 = sphi 0, %s109
    %s112 = sphi 0, %s111
    %s126 = sphi 0, %s112
    %s134 = sphi 0, %s136
    %s137 = sphi 0, %s134
    %s138 = sphi 0, %s137
    %s154 = sphi 0, %s138
  $region4: #{input_proj_forward.1} parent=0 // loop_header_branch
    %13 = sbr.rel (%p11) target = $region8
  $region5: #{input_proj_forward.1} parent=0 // loop_body
    %s15 = ssub.s32 %s10, 1
    %s16 = ssub.s32 %s10, 2
    %s23 = sadd.s32 1, %s18
    %p24 = scmp.ge.s32.totalorder %s23, 2
    %s25 = scalar_select %p24, 0, %s23
    %s26 = sadd.s32 1, %s17
    %s27 = scalar_select %p24, %s26, %s17
    %p28 = scmp.ge.s32.totalorder %s27, 2
    %s29 = scalar_select %p28, 0, %s27
    %s30 = ssub.s32 %s17, %s29
    %s31 = ssub.s32 %s18, %s25
    %s32 = sor.u32 %s30, %s31
    %p33 = scmp.eq.s32.totalorder %s32, 0
    %s35 = sadd.s32 %s34, 1
    %s36 = scalar_select %p33, %s34, %s35
    %p39 = pneg %p33
    %p40 = scmp.eq.s32.totalorder %s10, 3
    %p41 = por %p39, %p40
    %p42 = scmp.ne.s32.totalorder %s34, %s37
    %p43 = scmp.eq.s32.totalorder %s10, 0
    %p44 = por %p42, %p43
    %p45 = scmp.ne.s32.totalorder %s34, %s37
    %p46 = scmp.eq.s32.totalorder %s15, 3
    %p47 = por %p45, %p46
    %p48 = scmp.ne.s32.totalorder %s37, %s38
    %p49 = scmp.eq.s32.totalorder %s15, 0
    %p50 = por %p48, %p49
    %p51 = scmp.ne.s32.totalorder %s37, %s38
    %p52 = scmp.eq.s32.totalorder %s16, 3
    %p53 = por %p51, %p52
    %p55 = scmp.ne.s32.totalorder %s38, %s54
    %p56 = scmp.eq.s32.totalorder %s16, 0
    %p57 = por %p55, %p56
    %s58 = sadd.s32 %s18, 1
    %s59 = sadd.s32 %s25, 1
    %s60 = ssub.s32 %s17, %s29
    %s61 = ssub.s32 %s58, %s59
    %s62 = sor.u32 %s60, %s61
    %p63 = scmp.eq.s32.totalorder %s62, 0
    %s65 = sadd.s32 %s64, 1
    %s66 = scalar_select %p63, %s64, %s65
    %p69 = pneg %p63
    %p70 = scmp.eq.s32.totalorder %s10, 3
    %p71 = por %p69, %p70
    %p72 = scmp.ne.s32.totalorder %s64, %s67
    %p73 = scmp.eq.s32.totalorder %s10, 0
    %p74 = por %p72, %p73
    %p75 = scmp.ne.s32.totalorder %s64, %s67
    %p76 = scmp.eq.s32.totalorder %s15, 3
    %p77 = por %p75, %p76
    %p78 = scmp.ne.s32.totalorder %s67, %s68
    %p79 = scmp.eq.s32.totalorder %s15, 0
    %p80 = por %p78, %p79
    %p81 = scmp.ne.s32.totalorder %s67, %s68
    %p82 = scmp.eq.s32.totalorder %s16, 3
    %p83 = por %p81, %p82
    %p85 = scmp.ne.s32.totalorder %s68, %s84
    %p86 = scmp.eq.s32.totalorder %s16, 0
    %p87 = por %p85, %p86
    %s89 = sadd.s32 %s88, 1
    %p92 = scmp.eq.s32.totalorder %s10, 3
    %p93 = scmp.ne.s32.totalorder %s88, %s90
    %p94 = scmp.eq.s32.totalorder %s10, 0
    %p95 = por %p93, %p94
    %p96 = scmp.ne.s32.totalorder %s88, %s90
    %p97 = scmp.eq.s32.totalorder %s15, 3
    %p98 = por %p96, %p97
    %p99 = scmp.ne.s32.totalorder %s90, %s91
    %p100 = scmp.eq.s32.totalorder %s15, 0
    %p101 = por %p99, %p100
    %p102 = scmp.ne.s32.totalorder %s90, %s91
    %p103 = scmp.eq.s32.totalorder %s16, 3
    %p104 = por %p102, %p103
    %p106 = scmp.ne.s32.totalorder %s91, %s105
    %p107 = scmp.eq.s32.totalorder %s16, 0
    %p108 = por %p106, %p107
    %s110 = sadd.s32 %s109, 1
    %p113 = scmp.eq.s32.totalorder %s10, 3
    %p114 = scmp.ne.s32.totalorder %s109, %s111
    %p115 = scmp.eq.s32.totalorder %s10, 0
    %p116 = por %p114, %p115
    %p117 = scmp.ne.s32.totalorder %s109, %s111
    %p118 = scmp.eq.s32.totalorder %s15, 3
    %p119 = por %p117, %p118
    %p120 = scmp.ne.s32.totalorder %s111, %s112
    %p121 = scmp.eq.s32.totalorder %s15, 0
    %p122 = por %p120, %p121
    %p123 = scmp.ne.s32.totalorder %s111, %s112
    %p124 = scmp.eq.s32.totalorder %s16, 3
    %p125 = por %p123, %p124
    %p127 = scmp.ne.s32.totalorder %s112, %s126
    %p128 = scmp.eq.s32.totalorder %s16, 0
    %p129 = por %p127, %p128
    %s130 = ssub.s32 %s17, %s29
    %s131 = ssub.s32 %s18, %s25
    %s132 = sor.u32 %s130, %s131
    %p133 = scmp.eq.s32.totalorder %s132, 0
    %s135 = sadd.s32 %s134, 1
    %s136 = scalar_select %p133, %s134, %s135
    %p139 = pneg %p133
    %p140 = scmp.eq.s32.totalorder %s10, 3
    %p141 = por %p139, %p140
    %p142 = scmp.ne.s32.totalorder %s134, %s137
    %p143 = scmp.eq.s32.totalorder %s10, 0
    %p144 = por %p142, %p143
    %p145 = scmp.ne.s32.totalorder %s134, %s137
    %p146 = scmp.eq.s32.totalorder %s15, 3
    %p147 = por %p145, %p146
    %p148 = scmp.ne.s32.totalorder %s137, %s138
    %p149 = scmp.eq.s32.totalorder %s15, 0
    %p150 = por %p148, %p149
    %p151 = scmp.ne.s32.totalorder %s137, %s138
    %p152 = scmp.eq.s32.totalorder %s16, 3
    %p153 = por %p151, %p152
    %p155 = scmp.ne.s32.totalorder %s138, %s154
    %p156 = scmp.eq.s32.totalorder %s16, 0
    %p157 = por %p155, %p156
    %p158 = scmp.le.s32.totalorder 1, %s10
    %p159 = scmp.lt.s32.totalorder %s10, 5
    %p160 = pnand %p158, %p159
    %p161 = pneg %p160
    // Predicated region
    $region9: #{input_proj_forward.1} parent=5 // pred_check
      _
    $region10: #{input_proj_forward.1} parent=5 // pred_check_branch
      %163 = sbr.rel (%p160) target = $region12
    $region11: #{input_proj_forward.1} parent=5 // pred_region
      %s164 = ssub.s32 %s10, 1
      // Predicated region
      $region13: #{input_proj_forward.1} parent=11 // pred_check
        %p165 = pneg %p101
      $region14: #{input_proj_forward.1} parent=11 // pred_check_branch
        %167 = sbr.rel (%p165) target = $region16
      $region15: #{input_proj_forward.1} parent=11 // pred_region
        _
      $region16: #{input_proj_forward.1} parent=11 // pred_fallthru
        _
      // Predicated region
      $region17: #{input_proj_forward.1} parent=11 // pred_check
        %p168 = pneg %p122
      $region18: #{input_proj_forward.1} parent=11 // pred_check_branch
        %170 = sbr.rel (%p168) target = $region20
      $region19: #{input_proj_forward.1} parent=11 // pred_region
        _
      $region20: #{input_proj_forward.1} parent=11 // pred_fallthru
        _
    $region12: #{input_proj_forward.1} parent=5 // pred_fallthru
      _
    %p171 = scmp.lt.s32.totalorder %s10, 4
    // Predicated region
    $region21: #{input_proj_forward.1} parent=5 // pred_check
      %p172 = pneg %p171
    $region22: #{input_proj_forward.1} parent=5 // pred_check_branch
      %174 = sbr.rel (%p172) target = $region24
    $region23: #{input_proj_forward.1} parent=5 // pred_region
      // Predicated region
      $region25: #{input_proj_forward.1} parent=23 // pred_check
        %p175 = pneg %p44
      $region26: #{input_proj_forward.1} parent=23 // pred_check_branch
        %177 = sbr.rel (%p175) target = $region28
      $region27: #{input_proj_forward.1} parent=23 // pred_region
        %p178 = scmp.lt.s32.totalorder %s17, 1
        %s179 = scalar_select %p178, %s17, 1
        %p180 = scmp.lt.s32.totalorder %s18, 2
        %s181 = scalar_select %p180, %s18, 2
        %s182 = smul.addr %s179, 3
        %s183 = sadd.s32 %s181, %s182
        %s184 = smul.addr %s183, 4
        %s185 = scalar_lea.vmem %s0, %s184
      $region28: #{input_proj_forward.1} parent=23 // pred_fallthru
        _
      // Predicated region
      $region29: #{input_proj_forward.1} parent=23 // pred_check
        %p186 = pneg %p74
      $region30: #{input_proj_forward.1} parent=23 // pred_check_branch
        %188 = sbr.rel (%p186) target = $region32
      $region31: #{input_proj_forward.1} parent=23 // pred_region
        %s189 = sadd.s32 %s18, 1
        %p190 = scmp.lt.s32.totalorder %s17, 1
        %s191 = scalar_select %p190, %s17, 1
        %p192 = scmp.lt.s32.totalorder %s189, 2
        %s193 = scalar_select %p192, %s189, 2
        %s194 = smul.addr %s191, 3
        %s195 = sadd.s32 %s193, %s194
        %s196 = smul.addr %s195, 4
        %s197 = scalar_lea.vmem %s1, %s196
        %s198 = sadd.s32 %s18, 1
      $region32: #{input_proj_forward.1} parent=23 // pred_fallthru
        _
    $region24: #{input_proj_forward.1} parent=5 // pred_fallthru
      _
    %p199 = scmp.le.s32.totalorder 1, %s10
    %p200 = scmp.lt.s32.totalorder %s10, 5
    %p201 = pnand %p199, %p200
    %p202 = pneg %p201
    // Predicated region
    $region33: #{input_proj_forward.1} parent=5 // pred_check
      _
    $region34: #{input_proj_forward.1} parent=5 // pred_check_branch
      %204 = sbr.rel (%p201) target = $region36
    $region35: #{input_proj_forward.1} parent=5 // pred_region
      %s205 = ssub.s32 %s10, 1
      %p206 = scmp.lt.s32.totalorder %s19, 1
      %s207 = scalar_select %p206, %s19, 1
      %p208 = scmp.lt.s32.totalorder %s20, 2
      %s209 = scalar_select %p208, %s20, 2
      %s210 = smul.addr %s207, 3
      %s211 = sadd.s32 %s209, %s210
      %s212 = smul.addr %s211, 4
      %s213 = scalar_lea.vmem %s0, %s212
      %p214 = pneg %p50
      %p215 = pneg %p47
      %s216 = sadd.s32 %s20, 1
      %p217 = scmp.lt.s32.totalorder %s19, 1
      %s218 = scalar_select %p217, %s19, 1
      %p219 = scmp.lt.s32.totalorder %s216, 2
      %s220 = scalar_select %p219, %s216, 2
      %s221 = smul.addr %s218, 3
      %s222 = sadd.s32 %s220, %s221
      %s223 = smul.addr %s222, 4
      %s224 = scalar_lea.vmem %s1, %s223
      %p225 = pneg %p80
      %p226 = pneg %p77
      %p227 = pneg %p101
      %p228 = pneg %p98
      %p229 = pneg %p122
      %p230 = pneg %p119
      %p231 = pneg %p150
      %p232 = pneg %p147
      %s233 = smul.u32 16, %s20
      %p234 = scmp.lt.s32.totalorder %s19, 1
      %s235 = scalar_select %p234, %s19, 1
      %p236 = scmp.lt.s32.totalorder %s233, 31
      %s237 = scalar_select %p236, %s233, 31
      %s238 = smul.addr %s235, 32
      %s239 = sadd.s32 %s237, %s238
      %s240 = smul.addr %s239, 8
      %s241 = scalar_lea.vmem %s4, %s240
      %p242 = scmp.lt.s32.totalorder %s19, 1
      %s243 = scalar_select %p242, %s19, 1
      %p244 = scmp.lt.s32.totalorder %s20, 2
      %s245 = scalar_select %p244, %s20, 2
      %s246 = smul.addr %s243, 3
      %s247 = sadd.s32 %s245, %s246
      %s248 = smul.addr %s247, 4
      %s249 = scalar_lea.vmem %s0, %s248
      %s250 = sadd.s32 %s20, 1
      %p251 = scmp.lt.s32.totalorder %s19, 1
      %s252 = scalar_select %p251, %s19, 1
      %p253 = scmp.lt.s32.totalorder %s250, 2
      %s254 = scalar_select %p253, %s250, 2
      %s255 = smul.addr %s252, 3
      %s256 = sadd.s32 %s254, %s255
      %s257 = smul.addr %s256, 4
      %s258 = scalar_lea.vmem %s1, %s257
      %s259 = sadd.s32 %s20, 1
      %s260 = smul.u32 16, %s20
      %p261 = scmp.lt.s32.totalorder %s19, 1
      %s262 = scalar_select %p261, %s19, 1
      %p263 = scmp.lt.s32.totalorder %s260, 31
      %s264 = scalar_select %p263, %s260, 31
      %s265 = smul.addr %s262, 32
      %s266 = sadd.s32 %s264, %s265
      %s267 = smul.addr %s266, 8
      %s268 = scalar_lea.vmem %s4, %s267
      %s269 = smul.u32 16, %s20
      %v270 = vld [vmem:[%s249] sm:$0x7]
      %v271 = vld [vmem:[%s258] sm:$0x7]
      %v272 = vlaneseq
      %v273 = vand.u32 %v272, 127
      %vm274 = vcmp.lt.s32.totalorder %v273, 0
      %v275 = vsub.s32 0, %v273
      %v276 = vsel %vm274, %v275, %v273
      %v277 = vshrl.u32 %v276, 4
      %v278 = vand.u32 %v276, 15
      %v279 = vsub.s32 0, %v278
      %v280 = vsel %vm274, %v279, %v278
      %vm281 = vcmp.ne.s32.totalorder %v280, 0
      %vm282 = vcmp.lt.s32.totalorder %v280, 0
      %vm283 = vmand %vm282, %vm281
      %v284 = vadd.s32 %v280, 16
      %v285 = vsel %vm283, %v284, %v280
      %vm286 = vcmp.gt.s32.totalorder %v285, 0
      %vm287 = vcmp.lt.s32.totalorder %v285, 15
      %v288 = vsel %vm286, 1, 0
      %vm289 = vcmp.eq.s32.totalorder %v288, 1
      %292 = vrot.lane.b32.xlu0 %v270, 113
      %v293 = vpop.permute.xlu0 %292
      %294 = vrot.lane.b32.xlu0 %v271, 113
      %v295 = vpop.permute.xlu0 %294
      %vm296 = vcmask 924672
      %v297 = vsel %vm296, %v293, %v295
      %v299 = vsel %vm289, %v297, 0.0
      %300 = vst [vmem:[#allocation2] sm:$0x7] %v299
      %301 = vrot.lane.b32.xlu0 %v270, 112
      %v302 = vpop.permute.xlu0 %301
      %303 = vrot.lane.b32.xlu0 %v271, 112
      %v304 = vpop.permute.xlu0 %303
      %vm305 = vcmask 916480
      %v306 = vsel %vm305, %v302, %v304
      %308 = vst [vmem:[#allocation2 + $0x3] sm:$0x7] %v306
      %v309 = vsel %vm287, 1, 0
      %vm310 = vcmp.eq.s32.totalorder %v309, 1
      %311 = vrot.lane.b32.xlu0 %v270, 111
      %v312 = vpop.permute.xlu0 %311
      %313 = vrot.lane.b32.xlu0 %v271, 111
      %v314 = vpop.permute.xlu0 %313
      %vm315 = vcmask 908288
      %v316 = vsel %vm315, %v312, %v314
      %v318 = vsel %vm310, %v316, 0.0
      %319 = vst [vmem:[#allocation2 + $0x6] sm:$0x7] %v318
      %320 = vrot.lane.b32.xlu0 %v270, 97
      %v321 = vpop.permute.xlu0 %320
      %322 = vrot.lane.b32.xlu0 %v271, 97
      %v323 = vpop.permute.xlu0 %322
      %vm324 = vcmask 793600
      %v325 = vsel %vm324, %v321, %v323
      %v327 = vsel %vm289, %v325, 0.0
      %328 = vst [vmem:[#allocation2 + $0x9] sm:$0x7] %v327
      %329 = vrot.lane.b32.xlu0 %v270, 96
      %v330 = vpop.permute.xlu0 %329
      %331 = vrot.lane.b32.xlu0 %v271, 96
      %v332 = vpop.permute.xlu0 %331
      %vm333 = vcmask 785408
      %v334 = vsel %vm333, %v330, %v332
      %336 = vst [vmem:[#allocation2 + $0xc] sm:$0x7] %v334
      %337 = vrot.lane.b32.xlu0 %v270, 95
      %v338 = vpop.permute.xlu0 %337
      %339 = vrot.lane.b32.xlu0 %v271, 95
      %v340 = vpop.permute.xlu0 %339
      %vm341 = vcmask 777216
      %v342 = vsel %vm341, %v338, %v340
      %v344 = vsel %vm310, %v342, 0.0
      %345 = vst [vmem:[#allocation2 + $0xf] sm:$0x7] %v344
      %346 = vrot.lane.b32.xlu0 %v270, 81
      %v347 = vpop.permute.xlu0 %346
      %348 = vrot.lane.b32.xlu0 %v271, 81
      %v349 = vpop.permute.xlu0 %348
      %vm350 = vcmask 662528
      %v351 = vsel %vm350, %v347, %v349
      %v353 = vsel %vm289, %v351, 0.0
      %354 = vst [vmem:[#allocation2 + $0x12] sm:$0x7] %v353
      %355 = vrot.lane.b32.xlu0 %v270, 80
      %v356 = vpop.permute.xlu0 %355
      %357 = vrot.lane.b32.xlu0 %v271, 80
      %v358 = vpop.permute.xlu0 %357
      %vm359 = vcmask 654336
      %v360 = vsel %vm359, %v356, %v358
      %362 = vst [vmem:[#allocation2 + $0x15] sm:$0x7] %v360
      %363 = vrot.lane.b32.xlu0 %v270, 79
      %v364 = vpop.permute.xlu0 %363
      %365 = vrot.lane.b32.xlu0 %v271, 79
      %v366 = vpop.permute.xlu0 %365
      %vm367 = vcmask 646144
      %v368 = vsel %vm367, %v364, %v366
      %v370 = vsel %vm310, %v368, 0.0
      %371 = vst [vmem:[#allocation2 + $0x18] sm:$0x7] %v370
      %372 = vst [vmem:[#allocation2 + $0x1b] sm:$0x1f] 0.0
      %v373 = vld [vmem:[#allocation2] sm:$0xff]
      %v374 = vld [vmem:[#allocation2 + $0x8] sm:$0xff]
      %v375 = vld [vmem:[#allocation2 + $0x10] sm:$0xff]
      %v376 = vld [vmem:[#allocation2 + $0x18] sm:$0xff]
      %v377 = vld [vmem:[%s2] sm:$0xff]
      %v378 = vld [vmem:[%s2 + $0x8] sm:$0xff]
      %v379 = vld [vmem:[%s2 + $0x10] sm:$0xff]
      %v380 = vld [vmem:[%s2 + $0x18] sm:$0xff]
      %v381 = vld [vmem:[%s3] sm:$0x1]
      %v383 = vperm.slane %v381, 0
      %385 = vxpose.xlu0.b32.start [1/16] %v373, 128
      %386 = vxpose.xlu0.b32.cont [2/16] %v374, 128
      %387 = vxpose.xlu0.b32.cont [3/16] %v375, 128
      %388 = vxpose.xlu0.b32.cont [4/16] %v376, 128
      %389 = vxpose.xlu0.b32.cont [5/16] 0.0, 128
      %390 = vxpose.xlu0.b32.cont [6/16] 0.0, 128
      %391 = vxpose.xlu0.b32.cont [7/16] 0.0, 128
      %392 = vxpose.xlu0.b32.cont [8/16] 0.0, 128
      %393 = vxpose.xlu0.b32.cont [9/16] 0.0, 128
      %394 = vxpose.xlu0.b32.cont [10/16] 0.0, 128
      %395 = vxpose.xlu0.b32.cont [11/16] 0.0, 128
      %396 = vxpose.xlu0.b32.cont [12/16] 0.0, 128
      %397 = vxpose.xlu0.b32.cont [13/16] 0.0, 128
      %398 = vxpose.xlu0.b32.cont [14/16] 0.0, 128
      %399 = vxpose.xlu0.b32.cont [15/16] 0.0, 128
      %400 = vxpose.xlu0.b32.end [16/16] 0.0, 128
      %v401 = vpop.trf.xlu0
      %v402 = vpop.trf.xlu0
      %v403 = vpop.trf.xlu0
      %v404 = vpop.trf.xlu0
      %v405 = vpop.trf.xlu0
      %v406 = vpop.trf.xlu0
      %v407 = vpop.trf.xlu0
      %v408 = vpop.trf.xlu0
      %v409 = vpop.trf.xlu0
      %v410 = vpop.trf.xlu0
      %v411 = vpop.trf.xlu0
      %v412 = vpop.trf.xlu0
      %v413 = vpop.trf.xlu0
      %v414 = vpop.trf.xlu0
      %v415 = vpop.trf.xlu0
      %v416 = vpop.trf.xlu0
      %vm417 = vcmask 261120
      %v419 = vsel %vm417, %v401, 0
      %v422 = vsel %vm417, %v402, 0
      %v425 = vsel %vm417, %v403, 0
      %v428 = vsel %vm417, %v404, 0
      %v431 = vsel %vm417, %v405, 0
      %v434 = vsel %vm417, %v406, 0
      %v437 = vsel %vm417, %v407, 0
      %v440 = vsel %vm417, %v408, 0
      %v443 = vsel %vm417, %v409, 0
      %v446 = vsel %vm417, %v410, 0
      %v449 = vsel %vm417, %v411, 0
      %v452 = vsel %vm417, %v412, 0
      %v455 = vsel %vm417, %v413, 0
      %v458 = vsel %vm417, %v414, 0
      %v461 = vsel %vm417, %v415, 0
      %v464 = vsel %vm417, %v416, 0
      %466 = vmatpush.msra.mxu0 0.0
      %467 = vmatpush.msra.mxu0 0.0
      %468 = vmatpush.msra.mxu0 0.0
      %469 = vmatpush.msra.mxu0 0.0
      %470 = vmatpush.msra.mxu0 0.0
      %471 = vmatpush.msra.mxu0 0.0
      %472 = vmatpush.msra.mxu0 0.0
      %473 = vmatpush.msra.mxu0 0.0
      %474 = vmatpush.msra.mxu0 0.0
      %475 = vmatpush.msra.mxu0 0.0
      %476 = vmatpush.msra.mxu0 0.0
      %477 = vmatpush.msra.mxu0 0.0
      %478 = vmatpush.msra.mxu0 %v380
      %479 = vmatpush.msra.mxu0 %v379
      %480 = vmatpush.msra.mxu0 %v378
      %481 = vmatpush.msra.mxu0 %v377
      %482 = vmatmul.f32.gmra.mxu0 %v419
      %v483 = vpop.f32.mrf.mxu0
      %v484 = vadd.f32 %v383, %v483
      %485 = vmatmul.f32.gmra.mxu0 %v422
      %v486 = vpop.f32.mrf.mxu0
      %v487 = vadd.f32 %v383, %v486
      %488 = vmatmul.f32.gmra.mxu0 %v425
      %v489 = vpop.f32.mrf.mxu0
      %v490 = vadd.f32 %v383, %v489
      %491 = vmatmul.f32.gmra.mxu0 %v428
      %v492 = vpop.f32.mrf.mxu0
      %v493 = vadd.f32 %v383, %v492
      %494 = vmatmul.f32.gmra.mxu0 %v431
      %v495 = vpop.f32.mrf.mxu0
      %v496 = vadd.f32 %v383, %v495
      %497 = vmatmul.f32.gmra.mxu0 %v434
      %v498 = vpop.f32.mrf.mxu0
      %v499 = vadd.f32 %v383, %v498
      %500 = vmatmul.f32.gmra.mxu0 %v437
      %v501 = vpop.f32.mrf.mxu0
      %v502 = vadd.f32 %v383, %v501
      %503 = vmatmul.f32.gmra.mxu0 %v440
      %v504 = vpop.f32.mrf.mxu0
      %v505 = vadd.f32 %v383, %v504
      %506 = vmatmul.f32.gmra.mxu0 %v443
      %v507 = vpop.f32.mrf.mxu0
      %v508 = vadd.f32 %v383, %v507
      %509 = vmatmul.f32.gmra.mxu0 %v446
      %v510 = vpop.f32.mrf.mxu0
      %v511 = vadd.f32 %v383, %v510
      %512 = vmatmul.f32.gmra.mxu0 %v449
      %v513 = vpop.f32.mrf.mxu0
      %v514 = vadd.f32 %v383, %v513
      %515 = vmatmul.f32.gmra.mxu0 %v452
      %v516 = vpop.f32.mrf.mxu0
      %v517 = vadd.f32 %v383, %v516
      %518 = vmatmul.f32.gmra.mxu0 %v455
      %v519 = vpop.f32.mrf.mxu0
      %v520 = vadd.f32 %v383, %v519
      %521 = vmatmul.f32.gmra.mxu0 %v458
      %v522 = vpop.f32.mrf.mxu0
      %v523 = vadd.f32 %v383, %v522
      %524 = vmatmul.f32.gmra.mxu0 %v461
      %v525 = vpop.f32.mrf.mxu0
      %v526 = vadd.f32 %v383, %v525
      %527 = vmatmul.f32.gmra.mxu0 %v464
      %v528 = vpop.f32.mrf.mxu0
      %v529 = vadd.f32 %v383, %v528
      %530 = vdwg.mxu0
      %vm531 = vcmp.ge.f32.partialorder %v484, 0.0
      %vm532 = vcmp.ge.f32.partialorder %v487, 0.0
      %vm533 = vcmp.ge.f32.partialorder %v490, 0.0
      %vm534 = vcmp.ge.f32.partialorder %v493, 0.0
      %vm535 = vcmp.ge.f32.partialorder %v496, 0.0
      %vm536 = vcmp.ge.f32.partialorder %v499, 0.0
      %vm537 = vcmp.ge.f32.partialorder %v502, 0.0
      %vm538 = vcmp.ge.f32.partialorder %v505, 0.0
      %vm539 = vcmp.ge.f32.partialorder %v508, 0.0
      %vm540 = vcmp.ge.f32.partialorder %v511, 0.0
      %vm541 = vcmp.ge.f32.partialorder %v514, 0.0
      %vm542 = vcmp.ge.f32.partialorder %v517, 0.0
      %vm543 = vcmp.ge.f32.partialorder %v520, 0.0
      %vm544 = vcmp.ge.f32.partialorder %v523, 0.0
      %vm545 = vcmp.ge.f32.partialorder %v526, 0.0
      %vm546 = vcmp.ge.f32.partialorder %v529, 0.0
      %v547 = vmul.f32 %v484, 0.01
      %v548 = vmul.f32 %v487, 0.01
      %v549 = vmul.f32 %v490, 0.01
      %v550 = vmul.f32 %v493, 0.01
      %v551 = vmul.f32 %v496, 0.01
      %v552 = vmul.f32 %v499, 0.01
      %v553 = vmul.f32 %v502, 0.01
      %v554 = vmul.f32 %v505, 0.01
      %v555 = vmul.f32 %v508, 0.01
      %v556 = vmul.f32 %v511, 0.01
      %v557 = vmul.f32 %v514, 0.01
      %v558 = vmul.f32 %v517, 0.01
      %v559 = vmul.f32 %v520, 0.01
      %v560 = vmul.f32 %v523, 0.01
      %v561 = vmul.f32 %v526, 0.01
      %v562 = vmul.f32 %v529, 0.01
      %v563 = vsel %vm531, %v484, %v547
      %v564 = vsel %vm532, %v487, %v548
      %v565 = vsel %vm533, %v490, %v549
      %v566 = vsel %vm534, %v493, %v550
      %v567 = vsel %vm535, %v496, %v551
      %v568 = vsel %vm536, %v499, %v552
      %v569 = vsel %vm537, %v502, %v553
      %v570 = vsel %vm538, %v505, %v554
      %v571 = vsel %vm539, %v508, %v555
      %v572 = vsel %vm540, %v511, %v556
      %v573 = vsel %vm541, %v514, %v557
      %v574 = vsel %vm542, %v517, %v558
      %v575 = vsel %vm543, %v520, %v559
      %v576 = vsel %vm544, %v523, %v560
      %v577 = vsel %vm545, %v526, %v561
      %v578 = vsel %vm546, %v529, %v562
      %vm579 = vcmask 523264
      %580 = vst.msk [vmem:[%s268] sm:$0xff] %vm579, %v563
      %581 = vst.msk [vmem:[%s268 + $0x8] sm:$0xff] %vm579, %v564
      %582 = vst.msk [vmem:[%s268 + $0x10] sm:$0xff] %vm579, %v565
      %583 = vst.msk [vmem:[%s268 + $0x18] sm:$0xff] %vm579, %v566
      %584 = vst.msk [vmem:[%s268 + $0x20] sm:$0xff] %vm579, %v567
      %585 = vst.msk [vmem:[%s268 + $0x28] sm:$0xff] %vm579, %v568
      %586 = vst.msk [vmem:[%s268 + $0x30] sm:$0xff] %vm579, %v569
      %587 = vst.msk [vmem:[%s268 + $0x38] sm:$0xff] %vm579, %v570
      %588 = vst.msk [vmem:[%s268 + $0x40] sm:$0xff] %vm579, %v571
      %589 = vst.msk [vmem:[%s268 + $0x48] sm:$0xff] %vm579, %v572
      %590 = vst.msk [vmem:[%s268 + $0x50] sm:$0xff] %vm579, %v573
      %591 = vst.msk [vmem:[%s268 + $0x58] sm:$0xff] %vm579, %v574
      %592 = vst.msk [vmem:[%s268 + $0x60] sm:$0xff] %vm579, %v575
      %593 = vst.msk [vmem:[%s268 + $0x68] sm:$0xff] %vm579, %v576
      %594 = vst.msk [vmem:[%s268 + $0x70] sm:$0xff] %vm579, %v577
      %595 = vst.msk [vmem:[%s268 + $0x78] sm:$0xff] %vm579, %v578
      %s596 = smul.u32 16, %s20
      %p597 = scmp.lt.s32.totalorder %s19, 1
      %s598 = scalar_select %p597, %s19, 1
      %p599 = scmp.lt.s32.totalorder %s596, 31
      %s600 = scalar_select %p599, %s596, 31
      %s601 = smul.addr %s598, 32
      %s602 = sadd.s32 %s600, %s601
      %s603 = smul.addr %s602, 8
      %s604 = scalar_lea.vmem %s4, %s603
      // Predicated region
      $region37: #{input_proj_forward.1} parent=35 // pred_check
        %p605 = pneg %p147
      $region38: #{input_proj_forward.1} parent=35 // pred_check_branch
        %607 = sbr.rel (%p605) target = $region40
      $region39: #{input_proj_forward.1} parent=35 // pred_region
        %s608 = smul.u32 16, %s20
      $region40: #{input_proj_forward.1} parent=35 // pred_fallthru
        _
    $region36: #{input_proj_forward.1} parent=5 // pred_fallthru
      _
    %p609 = scmp.le.s32.totalorder 2, %s10
    // Predicated region
    $region41: #{input_proj_forward.1} parent=5 // pred_check
      %p610 = pneg %p609
    $region42: #{input_proj_forward.1} parent=5 // pred_check_branch
      %612 = sbr.rel (%p610) target = $region44
    $region43: #{input_proj_forward.1} parent=5 // pred_region
      %s613 = ssub.s32 %s10, 2
      // Predicated region
      $region45: #{input_proj_forward.1} parent=43 // pred_check
        %p614 = pneg %p153
      $region46: #{input_proj_forward.1} parent=43 // pred_check_branch
        %616 = sbr.rel (%p614) target = $region48
      $region47: #{input_proj_forward.1} parent=43 // pred_region
        %s617 = smul.u32 16, %s22
        %p618 = scmp.lt.s32.totalorder %s21, 1
        %s619 = scalar_select %p618, %s21, 1
        %p620 = scmp.lt.s32.totalorder %s617, 31
        %s621 = scalar_select %p620, %s617, 31
        %s622 = smul.addr %s619, 32
        %s623 = sadd.s32 %s621, %s622
        %s624 = smul.addr %s623, 8
        %s625 = scalar_lea.vmem %s4, %s624
      $region48: #{input_proj_forward.1} parent=43 // pred_fallthru
        _
    $region44: #{input_proj_forward.1} parent=5 // pred_fallthru
      _
  $region6: #{input_proj_forward.1} parent=0 // loop_footer
    %s14 = sadd.s32 1, %s10
  $region7: #{input_proj_forward.1} parent=0 // loop_footer_branch
    %9 = sbr.rel target = $region3
  $region8: #{input_proj_forward.1} parent=0 // loop_exit
    _

</llo_original>
